<compile_context>
chip_gen: v6e
topology: v6e:2x2x1
jax: 0.10.0
libtpu: 0.0.40
codegen_flags: <defaults>
</compile_context>

<pallas_src>
import functools

import jax
import jax.numpy as jnp
from jax import lax
from jax.experimental import pallas as pl
from jax.experimental.pallas import tpu as pltpu


def _round_up(n, m):
    return ((n + m - 1) // m) * m


def _cdiv(a, b):
    return (a + b - 1) // b


def mlp_kernel(x_ref, w1_ref, b1_ref, w2_ref, b2_ref, w3_ref, b3_ref, o_ref):
    # x_ref: [TM, in] (f32)  w*: [out, in] (bf16)  b*: [out, 1] (f32)
    # In-kernel cast to the compute dtype (free VPU work in an HBM-bound regime).
    x_c = x_ref[...].astype(w1_ref.dtype)

    # fc1 + ReLU: contract axis 1 of W with axis 1 of x -> [out1, TM] (= y1^T).
    h1 = lax.dot_general(w1_ref[...], x_c, (((1,), (1,)), ((), ())),
                         preferred_element_type=jnp.float32) + b1_ref[...]
    h1 = jnp.maximum(h1, 0.0).astype(w2_ref.dtype)

    # fc2 + ReLU: [out2, out1] @ [out1, TM] -> [out2, TM].
    h2 = jnp.dot(w2_ref[...], h1, preferred_element_type=jnp.float32) + b2_ref[...]
    h2 = jnp.maximum(h2, 0.0).astype(w3_ref.dtype)

    # fc3 (no activation): [out3, out2] @ [out2, TM] -> [out3, TM].
    out = jnp.dot(w3_ref[...], h2, preferred_element_type=jnp.float32) + b3_ref[...]
    o_ref[...] = out.astype(o_ref.dtype)


@functools.partial(jax.jit, static_argnames=("block_batch", "compute_dtype"))
def nn_forward(x, params, *, block_batch=16384, compute_dtype=jnp.bfloat16):
    """Forward pass of NN.

    x: [batch, input_size] float32 (consumed in native layout).
    params: (w1, b1, w2, b2, w3, b3) with w_i: [out, in] (torch layout),
            b_i: [out, 1] float32.
    Returns [batch, output_size] in x.dtype.
    """
    w1, b1, w2, b2, w3, b3 = params
    batch, in_size = x.shape
    out_size = w3.shape[0]

    # --- Tile-size selection -------------------------------------------------
    # Force 128 alignment of the (lane-axis) batch tile regardless of user input.
    max_tm = _round_up(max(int(block_batch), 128), 128)
    padded128 = _round_up(batch, 128)
    # Minimum number of tiles needed at max_tm.
    n_tiles = _cdiv(padded128, max_tm)
    # Ensure >=2 grid steps when the batch allows it, so v7x's 2 TensorCores
    # both get work (harmless on v5e/v6e).
    if padded128 >= 256:
        n_tiles = max(n_tiles, 2)
    # Even, 128-aligned split -> zero-pad waste bounded to <128 rows per tile.
    tm = _round_up(_cdiv(padded128, n_tiles), 128)
    n_tiles = _cdiv(padded128, tm)
    padded = n_tiles * tm
    grid = (n_tiles,)

    # Zero-pad the batch (pad rows produce ReLU(bias) garbage, sliced off below).
    if padded != batch:
        x = jnp.pad(x, ((0, padded - batch), (0, 0)))

    w1c = w1.astype(compute_dtype)
    w2c = w2.astype(compute_dtype)
    w3c = w3.astype(compute_dtype)
    b1f = b1.astype(jnp.float32)
    b2f = b2.astype(jnp.float32)
    b3f = b3.astype(jnp.float32)

    def resident(a):
        # Whole array, same block every grid step -> stays pinned in VMEM.
        return pl.BlockSpec(a.shape, lambda i: (0, 0))

    weight_bytes = sum(int(a.size) * a.dtype.itemsize
                       for a in (w1c, w2c, w3c, b1f, b2f, b3f))
    cost = pl.CostEstimate(
        flops=2 * padded * (in_size * w1.shape[0]
                            + w2.shape[1] * w2.shape[0]
                            + w3.shape[1] * out_size),
        transcendentals=0,
        bytes_accessed=padded * (in_size * x.dtype.itemsize + out_size * 4)
        + weight_bytes,
    )

    out_T = pl.pallas_call(
        mlp_kernel,
        out_shape=jax.ShapeDtypeStruct((out_size, padded), jnp.float32),
        grid=grid,
        in_specs=[
            # x streamed in native [batch, in] layout; in_size is full extent.
            pl.BlockSpec((tm, in_size), lambda i: (i, 0)),
            resident(w1c), resident(b1f),
            resident(w2c), resident(b2f),
            resident(w3c), resident(b3f),
        ],
        # Lane-dense output: [out_size, TM] so batch rides the 128-lane axis.
        out_specs=pl.BlockSpec((out_size, tm), lambda i: (0, i)),
        compiler_params=pltpu.CompilerParams(
            dimension_semantics=("parallel",),
            vmem_limit_bytes=32 * 1024 * 1024,
        ),
        cost_estimate=cost,
    )(x, w1c, b1f, w2c, b2f, w3c, b3f)

    return out_T[:, :batch].T.astype(x.dtype)


def init_params(key, input_size=23, hidden_size=10, output_size=3):
    """torch.nn.Linear-style init (U[-1/sqrt(fan_in), 1/sqrt(fan_in)]).

    Weights are stored torch-style as [out_features, in_features];
    biases as [out_features, 1].
    """
    keys = jax.random.split(key, 6)

    def linear(kw, kb, fan_in, fan_out):
        bound = 1.0 / jnp.sqrt(jnp.float32(fan_in))
        w = jax.random.uniform(kw, (fan_out, fan_in), jnp.float32, -bound, bound)
        b = jax.random.uniform(kb, (fan_out, 1), jnp.float32, -bound, bound)
        return w, b

    w1, b1 = linear(keys[0], keys[1], input_size, hidden_size)
    w2, b2 = linear(keys[2], keys[3], hidden_size, hidden_size)
    w3, b3 = linear(keys[4], keys[5], hidden_size, output_size)
    return (w1, b1, w2, b2, w3, b3)


def nn_forward_ref(x, params):
    """Pure-JAX f32 reference for correctness checking."""
    w1, b1, w2, b2, w3, b3 = params
    h1 = jnp.maximum(x @ w1.T + b1[:, 0], 0.0)
    h2 = jnp.maximum(h1 @ w2.T + b2[:, 0], 0.0)
    return h2 @ w3.T + b3[:, 0]


if __name__ == "__main__":
    key = jax.random.PRNGKey(0)
    k_params, k_x1, k_x2, k_x3 = jax.random.split(key, 4)

    input_size, hidden_size, output_size = 23, 10, 3
    params = init_params(k_params, input_size, hidden_size, output_size)

    # Small batch (single 128-wide lane tile, one grid step).
    batch = 8
    x = jax.random.normal(k_x1, (batch, input_size), jnp.float32)
    out = jax.block_until_ready(nn_forward(x, params))
    ref = nn_forward_ref(x, params)
    assert out.shape == (batch, output_size), out.shape
    assert jnp.allclose(out, ref, atol=3e-2, rtol=3e-2), "mismatch vs reference (batch=8)"

    # Non-multiple-of-128 batch: exercises padding + multi-step (2-tile) grid.
    batch2 = 300
    x2 = jax.random.normal(k_x2, (batch2, input_size), jnp.float32)
    out2 = jax.block_until_ready(nn_forward(x2, params))
    ref2 = nn_forward_ref(x2, params)
    assert out2.shape == (batch2, output_size), out2.shape
    assert jnp.allclose(out2, ref2, atol=3e-2, rtol=3e-2), "mismatch vs reference (batch=300)"

    # Misaligned user block_batch: must be rounded to a 128 multiple internally.
    batch3 = 600
    x3 = jax.random.normal(k_x3, (batch3, input_size), jnp.float32)
    out3 = jax.block_until_ready(nn_forward(x3, params, block_batch=300))
    ref3 = nn_forward_ref(x3, params)
    assert out3.shape == (batch3, output_size), out3.shape
    assert jnp.allclose(out3, ref3, atol=3e-2, rtol=3e-2), "mismatch vs reference (batch=600)"

    print("KERNEL_OK")
</pallas_src>

<mosaic_0001>
module attributes {stable_mosaic.version = 11 : i64} {
  func.func @mlp_kernel(%arg0: i32, %arg1: memref<128x23xf32, #tpu.memory_space<vmem>>, %arg2: memref<10x23xbf16, #tpu.memory_space<vmem>>, %arg3: memref<10x1xf32, #tpu.memory_space<vmem>>, %arg4: memref<10x10xbf16, #tpu.memory_space<vmem>>, %arg5: memref<10x1xf32, #tpu.memory_space<vmem>>, %arg6: memref<3x10xbf16, #tpu.memory_space<vmem>>, %arg7: memref<3x1xf32, #tpu.memory_space<vmem>>, %arg8: memref<3x128xf32, #tpu.memory_space<vmem>>) attributes {dimension_semantics = [#tpu.dimension_semantics<parallel>], iteration_bounds = array<i64: 1>, scalar_prefetch = 0 : i64, scratch_operands = 0 : i64, tpu.core_type = #tpu.core_type<tc>, window_params = [{transform_indices = @transform_0, window_bounds = array<i64: 128, 23>}, {pipeline_mode = #tpu.pipeline_mode<synchronous>, transform_indices = @transform_1, window_bounds = array<i64: 10, 23>}, {pipeline_mode = #tpu.pipeline_mode<synchronous>, transform_indices = @transform_2, window_bounds = array<i64: 10, 1>}, {pipeline_mode = #tpu.pipeline_mode<synchronous>, transform_indices = @transform_3, window_bounds = array<i64: 10, 10>}, {pipeline_mode = #tpu.pipeline_mode<synchronous>, transform_indices = @transform_4, window_bounds = array<i64: 10, 1>}, {pipeline_mode = #tpu.pipeline_mode<synchronous>, transform_indices = @transform_5, window_bounds = array<i64: 3, 10>}, {pipeline_mode = #tpu.pipeline_mode<synchronous>, transform_indices = @transform_6, window_bounds = array<i64: 3, 1>}, {transform_indices = @transform_7, window_bounds = array<i64: 3, 128>}]} {
    %c0 = arith.constant 0 : index
    %c0_0 = arith.constant 0 : index
    %0 = vector.load %arg1[%c0, %c0_0] : memref<128x23xf32, #tpu.memory_space<vmem>>, vector<128x23xf32>
    %1 = arith.truncf %0 : vector<128x23xf32> to vector<128x23xbf16>
    %c0_1 = arith.constant 0 : index
    %c0_2 = arith.constant 0 : index
    %2 = vector.load %arg2[%c0_1, %c0_2] : memref<10x23xbf16, #tpu.memory_space<vmem>>, vector<10x23xbf16>
    %cst = arith.constant dense<0.000000e+00> : vector<10x128xf32>
    %3 = tpu.matmul %2, %1, %cst {dimension_numbers = #tpu.dot_dimension_numbers<[1], [1], [0], [0], [0, 0, 1, 0], [], []>} : vector<10x23xbf16>, vector<128x23xbf16>, vector<10x128xf32> -> vector<10x128xf32>
    %c0_3 = arith.constant 0 : index
    %c0_4 = arith.constant 0 : index
    %4 = vector.load %arg3[%c0_3, %c0_4] : memref<10x1xf32, #tpu.memory_space<vmem>>, vector<10x1xf32>
    %5 = vector.broadcast %4 : vector<10x1xf32> to vector<10x128xf32>
    %6 = arith.addf %3, %5 : vector<10x128xf32>
    %cst_5 = arith.constant 0.000000e+00 : f32
    %7 = vector.broadcast %cst_5 : f32 to vector<10x128xf32>
    %8 = arith.maximumf %6, %7 : vector<10x128xf32>
    %9 = arith.truncf %8 : vector<10x128xf32> to vector<10x128xbf16>
    %c0_6 = arith.constant 0 : index
    %c0_7 = arith.constant 0 : index
    %10 = vector.load %arg4[%c0_6, %c0_7] : memref<10x10xbf16, #tpu.memory_space<vmem>>, vector<10x10xbf16>
    %cst_8 = arith.constant dense<0.000000e+00> : vector<10x128xf32>
    %11 = tpu.matmul %10, %9, %cst_8 {dimension_numbers = #tpu.dot_dimension_numbers<[1], [0], [0], [1], [0, 0, 1, 1], [], []>} : vector<10x10xbf16>, vector<10x128xbf16>, vector<10x128xf32> -> vector<10x128xf32>
    %c0_9 = arith.constant 0 : index
    %c0_10 = arith.constant 0 : index
    %12 = vector.load %arg5[%c0_9, %c0_10] : memref<10x1xf32, #tpu.memory_space<vmem>>, vector<10x1xf32>
    %13 = vector.broadcast %12 : vector<10x1xf32> to vector<10x128xf32>
    %14 = arith.addf %11, %13 : vector<10x128xf32>
    %cst_11 = arith.constant 0.000000e+00 : f32
    %15 = vector.broadcast %cst_11 : f32 to vector<10x128xf32>
    %16 = arith.maximumf %14, %15 : vector<10x128xf32>
    %17 = arith.truncf %16 : vector<10x128xf32> to vector<10x128xbf16>
    %c0_12 = arith.constant 0 : index
    %c0_13 = arith.constant 0 : index
    %18 = vector.load %arg6[%c0_12, %c0_13] : memref<3x10xbf16, #tpu.memory_space<vmem>>, vector<3x10xbf16>
    %cst_14 = arith.constant dense<0.000000e+00> : vector<3x128xf32>
    %19 = tpu.matmul %18, %17, %cst_14 {dimension_numbers = #tpu.dot_dimension_numbers<[1], [0], [0], [1], [0, 0, 1, 1], [], []>} : vector<3x10xbf16>, vector<10x128xbf16>, vector<3x128xf32> -> vector<3x128xf32>
    %c0_15 = arith.constant 0 : index
    %c0_16 = arith.constant 0 : index
    %20 = vector.load %arg7[%c0_15, %c0_16] : memref<3x1xf32, #tpu.memory_space<vmem>>, vector<3x1xf32>
    %21 = vector.broadcast %20 : vector<3x1xf32> to vector<3x128xf32>
    %22 = arith.addf %19, %21 : vector<3x128xf32>
    %c0_17 = arith.constant 0 : index
    %c0_18 = arith.constant 0 : index
    %23 = vector.load %arg8[%c0_17, %c0_18] : memref<3x128xf32, #tpu.memory_space<vmem>>, vector<3x128xf32>
    tpu.vector_store %arg8[%c0_17, %c0_18], %22 {strides = array<i32>} : memref<3x128xf32, #tpu.memory_space<vmem>>, vector<3x128xf32>,
    return
  }
  func.func @transform_0(%arg0: i32) -> (i32, i32) {
    %c0_i32 = arith.constant 0 : i32
    %c0_i32_0 = arith.constant 0 : i32
    return %arg0, %c0_i32 : i32, i32
  }
  func.func @transform_1(%arg0: i32) -> (i32, i32) {
    %c0_i32 = arith.constant 0 : i32
    %c0_i32_0 = arith.constant 0 : i32
    %c0_i32_1 = arith.constant 0 : i32
    return %c0_i32, %c0_i32_0 : i32, i32
  }
  func.func @transform_2(%arg0: i32) -> (i32, i32) {
    %c0_i32 = arith.constant 0 : i32
    %c0_i32_0 = arith.constant 0 : i32
    %c0_i32_1 = arith.constant 0 : i32
    return %c0_i32, %c0_i32_0 : i32, i32
  }
  func.func @transform_3(%arg0: i32) -> (i32, i32) {
    %c0_i32 = arith.constant 0 : i32
    %c0_i32_0 = arith.constant 0 : i32
    %c0_i32_1 = arith.constant 0 : i32
    return %c0_i32, %c0_i32_0 : i32, i32
  }
  func.func @transform_4(%arg0: i32) -> (i32, i32) {
    %c0_i32 = arith.constant 0 : i32
    %c0_i32_0 = arith.constant 0 : i32
    %c0_i32_1 = arith.constant 0 : i32
    return %c0_i32, %c0_i32_0 : i32, i32
  }
  func.func @transform_5(%arg0: i32) -> (i32, i32) {
    %c0_i32 = arith.constant 0 : i32
    %c0_i32_0 = arith.constant 0 : i32
    %c0_i32_1 = arith.constant 0 : i32
    return %c0_i32, %c0_i32_0 : i32, i32
  }
  func.func @transform_6(%arg0: i32) -> (i32, i32) {
    %c0_i32 = arith.constant 0 : i32
    %c0_i32_0 = arith.constant 0 : i32
    %c0_i32_1 = arith.constant 0 : i32
    return %c0_i32, %c0_i32_0 : i32, i32
  }
  func.func @transform_7(%arg0: i32) -> (i32, i32) {
    %c0_i32 = arith.constant 0 : i32
    %c0_i32_0 = arith.constant 0 : i32
    return %c0_i32, %arg0 : i32, i32
  }
}

</mosaic_0001>

<llo_original>
// kernel: nn_forward.1
$region0: #{nn_forward.1}
  #allocation0 [shape = 'u32[]', space=smem, size = 0x4, offset = 0x4, fixed_abs, tag = 'smem constant byte address 0x4 - core index']
  #allocation1 [shape = 'u32[144,128]{1,0:T(1,128)}', space=vmem, size = 0x12000, scoped, tag = 'internal scratch']
  %s0 = inlined_call_operand.vmem [shape: f32[128,23], index: 0, kind: input, shape index: {}]
  %s1 = inlined_call_operand.vmem [shape: bf16[10,23], index: 1, kind: input, shape index: {}]
  %s2 = inlined_call_operand.vmem [shape: f32[10,1], index: 2, kind: input, shape index: {}]
  %s3 = inlined_call_operand.vmem [shape: bf16[10,10], index: 3, kind: input, shape index: {}]
  %s4 = inlined_call_operand.vmem [shape: f32[10,1], index: 4, kind: input, shape index: {}]
  %s5 = inlined_call_operand.vmem [shape: bf16[3,10], index: 5, kind: input, shape index: {}]
  %s6 = inlined_call_operand.vmem [shape: f32[3,1], index: 6, kind: input, shape index: {}]
  %s7 = inlined_call_operand.vmem [shape: f32[3,128], index: 7, kind: output, shape index: {}]
  %s8 = sld [smem:[#allocation0]]
  $region38: #{nn_forward.1} parent=0
    _
  %s10 = ssub.s32 1, %s8
  %s11 = scalar_select 0, %s10, %s8
  // Predicated region
  $region2: #{nn_forward.1} parent=0 // pred_check
    _
  $region3: #{nn_forward.1} parent=0 // pred_check_branch
    %13 = sbr.rel (0) target = $region5
  $region4: #{nn_forward.1} parent=0 // pred_region
    _
  $region5: #{nn_forward.1} parent=0 // pred_fallthru
    _
  // Predicated region
  $region6: #{nn_forward.1} parent=0 // pred_check
    _
  $region7: #{nn_forward.1} parent=0 // pred_check_branch
    %15 = sbr.rel (0) target = $region9
  $region8: #{nn_forward.1} parent=0 // pred_region
    _
  $region9: #{nn_forward.1} parent=0 // pred_fallthru
    _
  // Predicated region
  $region10: #{nn_forward.1} parent=0 // pred_check
    _
  $region11: #{nn_forward.1} parent=0 // pred_check_branch
    %17 = sbr.rel (0) target = $region13
  $region12: #{nn_forward.1} parent=0 // pred_region
    _
  $region13: #{nn_forward.1} parent=0 // pred_fallthru
    _
  // Predicated region
  $region14: #{nn_forward.1} parent=0 // pred_check
    _
  $region15: #{nn_forward.1} parent=0 // pred_check_branch
    %19 = sbr.rel (0) target = $region17
  $region16: #{nn_forward.1} parent=0 // pred_region
    _
  $region17: #{nn_forward.1} parent=0 // pred_fallthru
    _
  // Predicated region
  $region18: #{nn_forward.1} parent=0 // pred_check
    _
  $region19: #{nn_forward.1} parent=0 // pred_check_branch
    %21 = sbr.rel (0) target = $region21
  $region20: #{nn_forward.1} parent=0 // pred_region
    _
  $region21: #{nn_forward.1} parent=0 // pred_fallthru
    _
  // Predicated region
  $region22: #{nn_forward.1} parent=0 // pred_check
    _
  $region23: #{nn_forward.1} parent=0 // pred_check_branch
    %23 = sbr.rel (0) target = $region25
  $region24: #{nn_forward.1} parent=0 // pred_region
    _
  $region25: #{nn_forward.1} parent=0 // pred_fallthru
    _
  // Predicated region
  $region26: #{nn_forward.1} parent=0 // pred_check
    _
  $region27: #{nn_forward.1} parent=0 // pred_check_branch
    %25 = sbr.rel (0) target = $region29
  $region28: #{nn_forward.1} parent=0 // pred_region
    _
  $region29: #{nn_forward.1} parent=0 // pred_fallthru
    _
  %v27 = vld [vmem:[%s0] sm:$0xff]
  %v28 = vld [vmem:[%s0 + $0x8] sm:$0xff]
  %v29 = vld [vmem:[%s0 + $0x10] sm:$0xff]
  %v30 = vld [vmem:[%s0 + $0x18] sm:$0xff]
  %v31 = vld [vmem:[%s0 + $0x20] sm:$0xff]
  %v32 = vld [vmem:[%s0 + $0x28] sm:$0xff]
  %v33 = vld [vmem:[%s0 + $0x30] sm:$0xff]
  %v34 = vld [vmem:[%s0 + $0x38] sm:$0xff]
  %v35 = vld [vmem:[%s0 + $0x40] sm:$0xff]
  %v36 = vld [vmem:[%s0 + $0x48] sm:$0xff]
  %v37 = vld [vmem:[%s0 + $0x50] sm:$0xff]
  %v38 = vld [vmem:[%s0 + $0x58] sm:$0xff]
  %v39 = vld [vmem:[%s0 + $0x60] sm:$0xff]
  %v40 = vld [vmem:[%s0 + $0x68] sm:$0xff]
  %v41 = vld [vmem:[%s0 + $0x70] sm:$0xff]
  %v42 = vld [vmem:[%s0 + $0x78] sm:$0xff]
  %v43 = vpack.c.bf16 %v28, %v27
  %v44 = vpack.c.bf16 %v30, %v29
  %v45 = vpack.c.bf16 %v32, %v31
  %v46 = vpack.c.bf16 %v34, %v33
  %v47 = vpack.c.bf16 %v36, %v35
  %v48 = vpack.c.bf16 %v38, %v37
  %v49 = vpack.c.bf16 %v40, %v39
  %v50 = vpack.c.bf16 %v42, %v41
  %v51 = vld [vmem:[%s1] sm:$0xf]
  %v52 = vld [vmem:[%s1 + $0x4] sm:$0x1]
  %v53 = vld [vmem:[%s2] sm:$0xff]
  %v54 = vld [vmem:[%s2 + $0x8] sm:$0x3]
  %56 = vset.pattern.permute.xlu0 0
  %57 = vperm.xlu0 %56, %v53
  %v58 = vpop.permute.xlu0 %57
  %61 = vset.pattern.permute.xlu0 0
  %62 = vperm.xlu0 %61, %v54
  %v63 = vpop.permute.xlu0 %62
  %v67 = vunpack.c.l.b16 %v51
  %v68 = vunpack.c.l.b16 %v52
  %v69 = vpack.c.b16 %v68, %v67
  %vm70 = vcmask 187392
  %v72 = vsel %vm70, %v69, 0
  %v75 = vsel %vm70, %v43, 0
  %v78 = vsel %vm70, %v44, 0
  %v81 = vsel %vm70, %v45, 0
  %v84 = vsel %vm70, %v46, 0
  %v87 = vsel %vm70, %v47, 0
  %v90 = vsel %vm70, %v48, 0
  %v93 = vsel %vm70, %v49, 0
  %v96 = vsel %vm70, %v50, 0
  %98 = vmatprep.subr.bf16.mxu0 0
  %99 = vmatpush1.bf16.xpose.msra.mxu0 %v96
  %100 = vmatprep.subr.bf16.mxu0 0
  %101 = vmatpush1.bf16.xpose.msra.mxu0 %v93
  %102 = vmatprep.subr.bf16.mxu0 0
  %103 = vmatpush1.bf16.xpose.msra.mxu0 %v90
  %104 = vmatprep.subr.bf16.mxu0 0
  %105 = vmatpush1.bf16.xpose.msra.mxu0 %v87
  %106 = vmatprep.subr.bf16.mxu0 0
  %107 = vmatpush1.bf16.xpose.msra.mxu0 %v84
  %108 = vmatprep.subr.bf16.mxu0 0
  %109 = vmatpush1.bf16.xpose.msra.mxu0 %v81
  %110 = vmatprep.subr.bf16.mxu0 0
  %111 = vmatpush1.bf16.xpose.msra.mxu0 %v78
  %112 = vmatprep.subr.bf16.mxu0 0
  %113 = vmatpush1.bf16.xpose.msra.mxu0 %v75
  %114 = vmatprep.subr.bf16.mxu0 0
  %115 = vmatpush2.bf16.xpose.msra.mxu0 0
  %116 = vmatprep.subr.bf16.mxu0 0
  %117 = vmatpush2.bf16.xpose.msra.mxu0 0
  %118 = vmatprep.subr.bf16.mxu0 0
  %119 = vmatpush2.bf16.xpose.msra.mxu0 0
  %120 = vmatprep.subr.bf16.mxu0 0
  %121 = vmatpush2.bf16.xpose.msra.mxu0 0
  %122 = vmatprep.subr.bf16.mxu0 0
  %123 = vmatpush2.bf16.xpose.msra.mxu0 0
  %124 = vmatprep.subr.bf16.mxu0 0
  %125 = vmatpush2.bf16.xpose.msra.mxu0 0
  %126 = vmatprep.subr.bf16.mxu0 0
  %127 = vmatpush2.bf16.xpose.msra.mxu0 0
  %128 = vmatprep.subr.bf16.mxu0 0
  %129 = vmatpush2.bf16.xpose.msra.mxu0 0
  %130 = vmatprep.mubr.bf16.mxu0 0
  %131 = vmatmul.mubr.bf16.gmra.mxu0 %v72
  %v132 = vpop.f32.mrf.mxu0
  %v133 = vadd.f32 %v58, %v132
  %v134 = vpop.f32.mrf.mxu0
  %v135 = vpop.f32.mrf.mxu0
  %v136 = vadd.f32 %v63, %v135
  %v137 = vpop.f32.mrf.mxu0
  %138 = vdwg.mxu0
  %v139 = vmax.f32 %v133, 0.0
  %v140 = vmax.f32 %v136, 0.0
  %v141 = vpack.c.bf16 %v140, %v139
  %v142 = vld [vmem:[%s3] sm:$0xf]
  %v143 = vld [vmem:[%s3 + $0x4] sm:$0x1]
  %v144 = vld [vmem:[%s4] sm:$0xff]
  %v145 = vld [vmem:[%s4 + $0x8] sm:$0x3]
  %147 = vset.pattern.permute.xlu0 0
  %148 = vperm.xlu0 %147, %v144
  %v149 = vpop.permute.xlu0 %148
  %152 = vset.pattern.permute.xlu0 0
  %153 = vperm.xlu0 %152, %v145
  %v154 = vpop.permute.xlu0 %153
  %v158 = vunpack.c.l.b16 %v142
  %v159 = vunpack.c.l.b16 %v143
  %v160 = vpack.c.b16 %v159, %v158
  %vm161 = vcmask 80896
  %v163 = vsel %vm161, %v160, 0
  %vm165 = vcmask 1044480
  %v167 = vsel %vm165, %v141, 0
  %169 = vmatprep.subr.bf16.mxu0 0
  %170 = vmatpush1.bf16.msra.mxu0 0
  %171 = vmatprep.subr.bf16.mxu0 0
  %172 = vmatpush1.bf16.msra.mxu0 0
  %173 = vmatprep.subr.bf16.mxu0 0
  %174 = vmatpush1.bf16.msra.mxu0 0
  %175 = vmatprep.subr.bf16.mxu0 0
  %176 = vmatpush1.bf16.msra.mxu0 0
  %177 = vmatprep.subr.bf16.mxu0 0
  %178 = vmatpush1.bf16.msra.mxu0 0
  %179 = vmatprep.subr.bf16.mxu0 0
  %180 = vmatpush1.bf16.msra.mxu0 0
  %181 = vmatprep.subr.bf16.mxu0 0
  %182 = vmatpush1.bf16.msra.mxu0 0
  %183 = vmatprep.subr.bf16.mxu0 0
  %184 = vmatpush1.bf16.msra.mxu0 %v167
  %185 = vmatprep.subr.bf16.mxu0 0
  %186 = vmatpush2.bf16.msra.mxu0 0
  %187 = vmatprep.subr.bf16.mxu0 0
  %188 = vmatpush2.bf16.msra.mxu0 0
  %189 = vmatprep.subr.bf16.mxu0 0
  %190 = vmatpush2.bf16.msra.mxu0 0
  %191 = vmatprep.subr.bf16.mxu0 0
  %192 = vmatpush2.bf16.msra.mxu0 0
  %193 = vmatprep.subr.bf16.mxu0 0
  %194 = vmatpush2.bf16.msra.mxu0 0
  %195 = vmatprep.subr.bf16.mxu0 0
  %196 = vmatpush2.bf16.msra.mxu0 0
  %197 = vmatprep.subr.bf16.mxu0 0
  %198 = vmatpush2.bf16.msra.mxu0 0
  %199 = vmatprep.subr.bf16.mxu0 0
  %200 = vmatpush2.bf16.msra.mxu0 0
  %201 = vmatprep.mubr.bf16.mxu0 0
  %202 = vmatmul.mubr.bf16.gmra.mxu0 %v163
  %v203 = vpop.f32.mrf.mxu0
  %v204 = vadd.f32 %v149, %v203
  %v205 = vpop.f32.mrf.mxu0
  %v206 = vpop.f32.mrf.mxu0
  %v207 = vadd.f32 %v154, %v206
  %v208 = vpop.f32.mrf.mxu0
  %209 = vdwg.mxu0
  %v210 = vmax.f32 %v204, 0.0
  %v211 = vmax.f32 %v207, 0.0
  %v212 = vpack.c.bf16 %v211, %v210
  %v213 = vld [vmem:[%s5] sm:$0x3]
  %v214 = vld [vmem:[%s6] sm:$0x7]
  %216 = vset.pattern.permute.xlu0 0
  %217 = vperm.xlu0 %216, %v214
  %v218 = vpop.permute.xlu0 %217
  %v221 = vsel %vm161, %v213, 0
  %v224 = vsel %vm165, %v212, 0
  %226 = vmatprep.subr.bf16.mxu0 0
  %227 = vmatpush1.bf16.msra.mxu0 0
  %228 = vmatprep.subr.bf16.mxu0 0
  %229 = vmatpush1.bf16.msra.mxu0 0
  %230 = vmatprep.subr.bf16.mxu0 0
  %231 = vmatpush1.bf16.msra.mxu0 0
  %232 = vmatprep.subr.bf16.mxu0 0
  %233 = vmatpush1.bf16.msra.mxu0 0
  %234 = vmatprep.subr.bf16.mxu0 0
  %235 = vmatpush1.bf16.msra.mxu0 0
  %236 = vmatprep.subr.bf16.mxu0 0
  %237 = vmatpush1.bf16.msra.mxu0 0
  %238 = vmatprep.subr.bf16.mxu0 0
  %239 = vmatpush1.bf16.msra.mxu0 0
  %240 = vmatprep.subr.bf16.mxu0 0
  %241 = vmatpush1.bf16.msra.mxu0 %v224
  %242 = vmatprep.subr.bf16.mxu0 0
  %243 = vmatpush2.bf16.msra.mxu0 0
  %244 = vmatprep.subr.bf16.mxu0 0
  %245 = vmatpush2.bf16.msra.mxu0 0
  %246 = vmatprep.subr.bf16.mxu0 0
  %247 = vmatpush2.bf16.msra.mxu0 0
  %248 = vmatprep.subr.bf16.mxu0 0
  %249 = vmatpush2.bf16.msra.mxu0 0
  %250 = vmatprep.subr.bf16.mxu0 0
  %251 = vmatpush2.bf16.msra.mxu0 0
  %252 = vmatprep.subr.bf16.mxu0 0
  %253 = vmatpush2.bf16.msra.mxu0 0
  %254 = vmatprep.subr.bf16.mxu0 0
  %255 = vmatpush2.bf16.msra.mxu0 0
  %256 = vmatprep.subr.bf16.mxu0 0
  %257 = vmatpush2.bf16.msra.mxu0 0
  %258 = vmatprep.mubr.bf16.mxu0 0
  %259 = vmatmul.mubr.bf16.gmra.mxu0 %v221
  %v260 = vpop.f32.mrf.mxu0
  %v261 = vadd.f32 %v218, %v260
  %v262 = vpop.f32.mrf.mxu0
  %v263 = vpop.f32.mrf.mxu0
  %v264 = vpop.f32.mrf.mxu0
  %265 = vdwg.mxu0
  %266 = vst [vmem:[%s7] sm:$0x7] %v261
  // Predicated region
  $region30: #{nn_forward.1} parent=0 // pred_check
    _
  $region31: #{nn_forward.1} parent=0 // pred_check_branch
    %268 = sbr.rel (0) target = $region33
  $region32: #{nn_forward.1} parent=0 // pred_region
    _
  $region33: #{nn_forward.1} parent=0 // pred_fallthru
    _
  // Predicated region
  $region34: #{nn_forward.1} parent=0 // pred_check
    _
  $region35: #{nn_forward.1} parent=0 // pred_check_branch
    %270 = sbr.rel (0) target = $region37
  $region36: #{nn_forward.1} parent=0 // pred_region
    _
  $region37: #{nn_forward.1} parent=0 // pred_fallthru
    _

</llo_original>
